<compile_context>
chip_gen: v7x
topology: tpu7x:2x2x1
jax: 0.10.0
libtpu: 0.0.40
codegen_flags: <defaults>
</compile_context>

<pallas_src>
import jax
import jax.numpy as jnp
from jax import lax
from jax.experimental import pallas as pl
from jax.experimental.pallas import tpu as pltpu

# ---- problem configuration (small synthetic shapes) -------------------------
N, C_IN, H, W = 2, 4, 16, 16         # input  (NCHW)
C_OUT = 8                            # output channels of the inner conv
KH, KW = 3, 3                        # conv kernel, padding=1, stride=1
K = KH * KW * C_IN                   # im2col contraction depth = 36
K_PAD = 40                           # K rounded up to a sublane multiple (8)
HW = H * W                           # 256 spatial positions per image
NHW = N * HW                         # 512 lanes: batch folded into the lane axis
EPS = 1e-5                           # InstanceNorm2d default eps (affine=False)
USE_BF16_OPERANDS = False            # keep f32 so the 1e-4 check vs f32 ref passes


def _common_block_kernel(p_ref, w_ref, o_ref):
    """Fused conv(3x3, pad=1) + InstanceNorm2d(affine=False) + ReLU, whole batch.

    p_ref: (K_PAD, N*HW)   im2col patches, batch folded into the lane axis
    w_ref: (C_OUT, K_PAD)  conv weights, rows ordered (kh, kw, c_in), zero-padded
    o_ref: (N, C_OUT, HW)  output, already NCHW-flat
    """
    # One MXU matmul over the folded batch: (C_OUT, K_PAD) x (K_PAD, N*HW) -> f32.
    acc = jnp.dot(w_ref[...], p_ref[...], preferred_element_type=jnp.float32)

    inv_hw = jnp.float32(1.0 / HW)
    # Per-image InstanceNorm on static, 128-lane-aligned 256-wide slabs (N is tiny
    # and static, so this unrolls to N fused reduce/normalize/store sequences).
    for n in range(N):
        sl = acc[:, n * HW:(n + 1) * HW]                               # (C_OUT, HW)
        mean = jnp.sum(sl, axis=-1, keepdims=True) * inv_hw            # (C_OUT, 1)
        mean_sq = jnp.sum(sl * sl, axis=-1, keepdims=True) * inv_hw    # (C_OUT, 1)
        var = mean_sq - mean * mean
        y = (sl - mean) * lax.rsqrt(var + EPS)
        # ReLU (Dropout(0.1) is identity in eval mode); lane-dense 256-wide store.
        o_ref[n] = jnp.maximum(y, 0.0).astype(o_ref.dtype)


def prepare_conv_weight(w_oihw, bias=None):
    """One-time parameter prep (hoisted out of the per-forward wrapper).

    OIHW -> (C_OUT, KH, KW, C_IN) -> (C_OUT, K), zero-padded to K_PAD columns.
    `bias` is accepted for API parity but intentionally unused: InstanceNorm2d
    (affine=False) subtracts the per-(n, c) mean, which exactly cancels any
    per-channel constant added by the conv bias.
    """
    del bias
    w_mat = jnp.transpose(w_oihw, (0, 2, 3, 1)).reshape(C_OUT, K)
    w_mat = jnp.pad(w_mat, ((0, 0), (0, K_PAD - K)))
    if USE_BF16_OPERANDS:
        w_mat = w_mat.astype(jnp.bfloat16)
    return w_mat


def common_block_forward(x_nchw, w_mat):
    """x_nchw: (N, C_IN, H, W) f32, w_mat: (C_OUT, K_PAD) -> (N, C_OUT, H, W) f32."""
    # --- wrapper-side im2col, batch folded into the trailing (lane) axis ---------
    # Pure XLA layout plumbing (~80 KB slab); see header note on allow_input_fusion.
    x_pad = jnp.pad(x_nchw, ((0, 0), (0, 0), (1, 1), (1, 1)))   # (N, C_IN, H+2, W+2)
    taps = [x_pad[:, :, kh:kh + H, kw:kw + W]                   # each (N, C_IN, H, W)
            for kh in range(KH) for kw in range(KW)]
    patches = (jnp.stack(taps, axis=0)                          # (9, N, C_IN, H, W)
               .transpose(0, 2, 1, 3, 4)                        # (9, C_IN, N, H, W)
               .reshape(K, NHW))                                # (36, 512)
    patches = jnp.pad(patches, ((0, K_PAD - K), (0, 0)))        # zero rows match zero w cols
    if USE_BF16_OPERANDS:
        patches = patches.astype(jnp.bfloat16)

    out_flat = pl.pallas_call(
        _common_block_kernel,
        out_shape=jax.ShapeDtypeStruct((N, C_OUT, HW), jnp.float32),
        grid=(1,),                                              # single step, one DMA pair
        in_specs=[
            pl.BlockSpec((K_PAD, NHW), lambda i: (0, 0)),
            pl.BlockSpec((C_OUT, K_PAD), lambda i: (0, 0)),
        ],
        out_specs=pl.BlockSpec((N, C_OUT, HW), lambda i: (0, 0, 0)),
        compiler_params=pltpu.CompilerParams(
            dimension_semantics=("arbitrary",)),                # single step; no sharding
    )(patches, w_mat)

    return out_flat.reshape(N, C_OUT, H, W)                     # already NCHW order


def _reference_forward(x_nchw, w_oihw, bias):
    """Pure-JAX reference: conv2d(pad=1, bias) -> InstanceNorm2d -> ReLU."""
    conv = lax.conv_general_dilated(
        x_nchw, w_oihw, window_strides=(1, 1), padding=((1, 1), (1, 1)),
        dimension_numbers=("NCHW", "OIHW", "NCHW"))
    conv = conv + bias[None, :, None, None]
    mean = jnp.mean(conv, axis=(2, 3), keepdims=True)
    var = jnp.mean((conv - mean) ** 2, axis=(2, 3), keepdims=True)
    normed = (conv - mean) * lax.rsqrt(var + EPS)
    return jnp.maximum(normed, 0.0)


if __name__ == "__main__":
    key = jax.random.PRNGKey(0)
    kx, kw, kb = jax.random.split(key, 3)

    x = jax.random.normal(kx, (N, C_IN, H, W), dtype=jnp.float32)

    # Deterministic Conv2d-style init: U(-bound, bound), bound = 1/sqrt(fan_in)
    fan_in = C_IN * KH * KW
    bound = 1.0 / (fan_in ** 0.5)
    w = jax.random.uniform(kw, (C_OUT, C_IN, KH, KW),
                           minval=-bound, maxval=bound, dtype=jnp.float32)
    b = jax.random.uniform(kb, (C_OUT,),
                           minval=-bound, maxval=bound, dtype=jnp.float32)

    w_mat = prepare_conv_weight(w, b)          # hoisted: once per parameter set
    out = common_block_forward(x, w_mat)
    out = jax.block_until_ready(out)

    ref = _reference_forward(x, w, b)
    assert out.shape == (N, C_OUT, H, W)
    assert jnp.allclose(out, ref, rtol=1e-4, atol=1e-4), "mismatch vs reference"

    print("KERNEL_OK")
</pallas_src>

<mosaic_0001>
module attributes {stable_mosaic.version = 11 : i64} {
  func.func @_common_block_kernel(%arg0: i32, %arg1: memref<40x512xf32, #tpu.memory_space<vmem>>, %arg2: memref<8x40xf32, #tpu.memory_space<vmem>>, %arg3: memref<2x8x256xf32, #tpu.memory_space<vmem>>) attributes {dimension_semantics = [#tpu.dimension_semantics<arbitrary>], iteration_bounds = array<i64: 1>, scalar_prefetch = 0 : i64, scratch_operands = 0 : i64, tpu.core_type = #tpu.core_type<tc>, window_params = [{pipeline_mode = #tpu.pipeline_mode<synchronous>, transform_indices = @transform_0, window_bounds = array<i64: 40, 512>}, {pipeline_mode = #tpu.pipeline_mode<synchronous>, transform_indices = @transform_1, window_bounds = array<i64: 8, 40>}, {pipeline_mode = #tpu.pipeline_mode<synchronous>, transform_indices = @transform_2, window_bounds = array<i64: 2, 8, 256>}]} {
    %c0 = arith.constant 0 : index
    %c0_0 = arith.constant 0 : index
    %0 = vector.load %arg2[%c0, %c0_0] : memref<8x40xf32, #tpu.memory_space<vmem>>, vector<8x40xf32>
    %c0_1 = arith.constant 0 : index
    %c0_2 = arith.constant 0 : index
    %1 = vector.load %arg1[%c0_1, %c0_2] : memref<40x512xf32, #tpu.memory_space<vmem>>, vector<40x512xf32>
    %cst = arith.constant dense<0.000000e+00> : vector<8x512xf32>
    %2 = tpu.matmul %0, %1, %cst {dimension_numbers = #tpu.dot_dimension_numbers<[1], [0], [0], [1], [0, 0, 1, 1], [], []>} : vector<8x40xf32>, vector<40x512xf32>, vector<8x512xf32> -> vector<8x512xf32>
    %3 = vector.extract_strided_slice %2 {offsets = [0, 0], sizes = [8, 256], strides = [1, 1]} : vector<8x512xf32> to vector<8x256xf32>
    %cst_3 = arith.constant dense<0.000000e+00> : vector<8xf32>
    %4 = vector.multi_reduction <add>, %3, %cst_3 [1] : vector<8x256xf32> to vector<8xf32>
    %5 = vector.shape_cast %4 : vector<8xf32> to vector<8x1xf32>
    %cst_4 = arith.constant 3.906250e-03 : f32
    %6 = vector.broadcast %cst_4 : f32 to vector<8x1xf32>
    %7 = arith.mulf %5, %6 : vector<8x1xf32>
    %8 = arith.mulf %3, %3 : vector<8x256xf32>
    %cst_5 = arith.constant dense<0.000000e+00> : vector<8xf32>
    %9 = vector.multi_reduction <add>, %8, %cst_5 [1] : vector<8x256xf32> to vector<8xf32>
    %10 = vector.shape_cast %9 : vector<8xf32> to vector<8x1xf32>
    %cst_6 = arith.constant 3.906250e-03 : f32
    %11 = vector.broadcast %cst_6 : f32 to vector<8x1xf32>
    %12 = arith.mulf %10, %11 : vector<8x1xf32>
    %13 = arith.mulf %7, %7 : vector<8x1xf32>
    %14 = arith.subf %12, %13 : vector<8x1xf32>
    %15 = vector.broadcast %7 : vector<8x1xf32> to vector<8x256xf32>
    %16 = arith.subf %3, %15 : vector<8x256xf32>
    %cst_7 = arith.constant 9.99999974E-6 : f32
    %17 = vector.broadcast %cst_7 : f32 to vector<8x1xf32>
    %18 = arith.addf %14, %17 : vector<8x1xf32>
    %19 = math.rsqrt %18 : vector<8x1xf32>
    %20 = vector.broadcast %19 : vector<8x1xf32> to vector<8x256xf32>
    %21 = arith.mulf %16, %20 : vector<8x256xf32>
    %cst_8 = arith.constant 0.000000e+00 : f32
    %22 = vector.broadcast %cst_8 : f32 to vector<8x256xf32>
    %23 = arith.maximumf %21, %22 : vector<8x256xf32>
    %c0_9 = arith.constant 0 : index
    %c0_10 = arith.constant 0 : index
    %c0_11 = arith.constant 0 : index
    %24 = vector.load %arg3[%c0_9, %c0_10, %c0_11] : memref<2x8x256xf32, #tpu.memory_space<vmem>>, vector<1x8x256xf32>
    %25 = vector.shape_cast %24 : vector<1x8x256xf32> to vector<8x256xf32>
    %26 = vector.shape_cast %23 : vector<8x256xf32> to vector<1x8x256xf32>
    tpu.vector_store %arg3[%c0_9, %c0_10, %c0_11], %26 {strides = array<i32>} : memref<2x8x256xf32, #tpu.memory_space<vmem>>, vector<1x8x256xf32>,
    %27 = vector.extract_strided_slice %2 {offsets = [0, 256], sizes = [8, 256], strides = [1, 1]} : vector<8x512xf32> to vector<8x256xf32>
    %cst_12 = arith.constant dense<0.000000e+00> : vector<8xf32>
    %28 = vector.multi_reduction <add>, %27, %cst_12 [1] : vector<8x256xf32> to vector<8xf32>
    %29 = vector.shape_cast %28 : vector<8xf32> to vector<8x1xf32>
    %cst_13 = arith.constant 3.906250e-03 : f32
    %30 = vector.broadcast %cst_13 : f32 to vector<8x1xf32>
    %31 = arith.mulf %29, %30 : vector<8x1xf32>
    %32 = arith.mulf %27, %27 : vector<8x256xf32>
    %cst_14 = arith.constant dense<0.000000e+00> : vector<8xf32>
    %33 = vector.multi_reduction <add>, %32, %cst_14 [1] : vector<8x256xf32> to vector<8xf32>
    %34 = vector.shape_cast %33 : vector<8xf32> to vector<8x1xf32>
    %cst_15 = arith.constant 3.906250e-03 : f32
    %35 = vector.broadcast %cst_15 : f32 to vector<8x1xf32>
    %36 = arith.mulf %34, %35 : vector<8x1xf32>
    %37 = arith.mulf %31, %31 : vector<8x1xf32>
    %38 = arith.subf %36, %37 : vector<8x1xf32>
    %39 = vector.broadcast %31 : vector<8x1xf32> to vector<8x256xf32>
    %40 = arith.subf %27, %39 : vector<8x256xf32>
    %cst_16 = arith.constant 9.99999974E-6 : f32
    %41 = vector.broadcast %cst_16 : f32 to vector<8x1xf32>
    %42 = arith.addf %38, %41 : vector<8x1xf32>
    %43 = math.rsqrt %42 : vector<8x1xf32>
    %44 = vector.broadcast %43 : vector<8x1xf32> to vector<8x256xf32>
    %45 = arith.mulf %40, %44 : vector<8x256xf32>
    %cst_17 = arith.constant 0.000000e+00 : f32
    %46 = vector.broadcast %cst_17 : f32 to vector<8x256xf32>
    %47 = arith.maximumf %45, %46 : vector<8x256xf32>
    %c1 = arith.constant 1 : index
    %c0_18 = arith.constant 0 : index
    %c0_19 = arith.constant 0 : index
    %48 = vector.load %arg3[%c1, %c0_18, %c0_19] : memref<2x8x256xf32, #tpu.memory_space<vmem>>, vector<1x8x256xf32>
    %49 = vector.shape_cast %48 : vector<1x8x256xf32> to vector<8x256xf32>
    %50 = vector.shape_cast %47 : vector<8x256xf32> to vector<1x8x256xf32>
    tpu.vector_store %arg3[%c1, %c0_18, %c0_19], %50 {strides = array<i32>} : memref<2x8x256xf32, #tpu.memory_space<vmem>>, vector<1x8x256xf32>,
    return
  }
  func.func @transform_0(%arg0: i32) -> (i32, i32) {
    %c0_i32 = arith.constant 0 : i32
    %c0_i32_0 = arith.constant 0 : i32
    %c0_i32_1 = arith.constant 0 : i32
    return %c0_i32, %c0_i32_0 : i32, i32
  }
  func.func @transform_1(%arg0: i32) -> (i32, i32) {
    %c0_i32 = arith.constant 0 : i32
    %c0_i32_0 = arith.constant 0 : i32
    %c0_i32_1 = arith.constant 0 : i32
    return %c0_i32, %c0_i32_0 : i32, i32
  }
  func.func @transform_2(%arg0: i32) -> (i32, i32, i32) {
    %c0_i32 = arith.constant 0 : i32
    %c0_i32_0 = arith.constant 0 : i32
    %c0_i32_1 = arith.constant 0 : i32
    %c0_i32_2 = arith.constant 0 : i32
    return %c0_i32, %c0_i32_0, %c0_i32_1 : i32, i32, i32
  }
}

</mosaic_0001>

<llo_original>
// kernel: tpu_custom_call.1
$region0: #{tpu_custom_call.1}
  #allocation0 [shape = 'u32[]', space=smem, size = 0x4, offset = 0x4, fixed_abs, tag = 'smem constant byte address 0x4 - core index']
  #allocation1 [shape = 'u32[144,128]{1,0:T(1,128)}', space=vmem, size = 0x12000, scoped, tag = 'internal scratch']
  %s0 = inlined_call_operand.hbm [shape: f32[40,512], index: 0, kind: input, shape index: {}]
  %s1 = inlined_call_operand.hbm [shape: f32[8,40], index: 1, kind: input, shape index: {}]
  %s2 = inlined_call_operand.hbm [shape: f32[2,8,256], index: 2, kind: output, shape index: {}]
  %s3 = sld [smem:[#allocation0]]
  $region26: #{tpu_custom_call.1} parent=0
    _
  %s5 = ssub.s32 1, %s3
  %s6 = scalar_select 0, %s5, %s3
  $region1: #{tpu_custom_call.1} parent=0
    #allocation2 [shape = 'u8[81920]{0}', space=vmem, size = 0x14000, scoped, tag = 'input window, operand 0, single buffered']
    #allocation3 [shape = 's32[1]{0}', space=sflag, size = 0x4, scoped, tag = 'scoped memory for tpu_custom_call.1']
    #allocation4 [shape = 's32[1]{0}', space=sflag, size = 0x4, scoped, tag = 'scoped memory for tpu_custom_call.1']
    #allocation5 [shape = 'u8[4096]{0}', space=vmem, size = 0x1000, scoped, tag = 'input window, operand 1, single buffered']
    #allocation6 [shape = 's32[1]{0}', space=sflag, size = 0x4, scoped, tag = 'scoped memory for tpu_custom_call.1']
    #allocation7 [shape = 'u8[16384]{0}', space=vmem, size = 0x4000, scoped, tag = 'output window, operand 0, single buffered']
    %7 = vsyncpa [#allocation3], 0
    %8 = vsyncpa [#allocation6], 0
    %9 = vsyncpa [#allocation4], 0
    // Predicated region
    $region2: #{tpu_custom_call.1} parent=1 // pred_check
      _
    $region3: #{tpu_custom_call.1} parent=1 // pred_check_branch
      %11 = sbr.rel (0) target = $region5
    $region4: #{tpu_custom_call.1} parent=1 // pred_region
      %s13 = ssub.s32 2560, 2560
      %14 = vsyncadd [#allocation3], %s13
      %s15 = sshll.u32 [#allocation2], 4
      %s16 = int_to_ptr.vmem [resolvable:$true] %s15
      %21 = dma.hbm_to_vmem [thread:$0]  %s0, 2560, %s16, [#allocation3], 512, 512, 32
    $region5: #{tpu_custom_call.1} parent=1 // pred_fallthru
      _
    // Predicated region
    $region6: #{tpu_custom_call.1} parent=1 // pred_check
      _
    $region7: #{tpu_custom_call.1} parent=1 // pred_check_branch
      %23 = sbr.rel (0) target = $region9
    $region8: #{tpu_custom_call.1} parent=1 // pred_region
      %s25 = ssub.s32 128, 128
      %26 = vsyncadd [#allocation6], %s25
      %s28 = sshll.u32 [#allocation5], 4
      %s29 = int_to_ptr.vmem [resolvable:$true] %s28
      %31 = dma.hbm_to_vmem [thread:$0]  %s1, 128, %s29, [#allocation6]
    $region9: #{tpu_custom_call.1} parent=1 // pred_fallthru
      _
    // Predicated region
    $region10: #{tpu_custom_call.1} parent=1 // pred_check
      _
    $region11: #{tpu_custom_call.1} parent=1 // pred_check_branch
      %33 = sbr.rel (0) target = $region13
    $region12: #{tpu_custom_call.1} parent=1 // pred_region
      %34 = dma.done [#allocation3], 2560
    $region13: #{tpu_custom_call.1} parent=1 // pred_fallthru
      _
    // Predicated region
    $region14: #{tpu_custom_call.1} parent=1 // pred_check
      _
    $region15: #{tpu_custom_call.1} parent=1 // pred_check_branch
      %36 = sbr.rel (0) target = $region17
    $region16: #{tpu_custom_call.1} parent=1 // pred_region
      %37 = dma.done [#allocation6], 128
    $region17: #{tpu_custom_call.1} parent=1 // pred_fallthru
      _
    %v38 = vld [vmem:[#allocation5] sm:$0xff]
    %v39 = vld [vmem:[#allocation2] sm:$0xff]
    %v40 = vld [vmem:[#allocation2 + $0x8] sm:$0xff]
    %v41 = vld [vmem:[#allocation2 + $0x10] sm:$0xff]
    %v42 = vld [vmem:[#allocation2 + $0x18] sm:$0xff]
    %v43 = vld [vmem:[#allocation2 + $0x20] sm:$0xff]
    %v44 = vld [vmem:[#allocation2 + $0x28] sm:$0xff]
    %v45 = vld [vmem:[#allocation2 + $0x30] sm:$0xff]
    %v46 = vld [vmem:[#allocation2 + $0x38] sm:$0xff]
    %v47 = vld [vmem:[#allocation2 + $0x40] sm:$0xff]
    %v48 = vld [vmem:[#allocation2 + $0x48] sm:$0xff]
    %v49 = vld [vmem:[#allocation2 + $0x50] sm:$0xff]
    %v50 = vld [vmem:[#allocation2 + $0x58] sm:$0xff]
    %v51 = vld [vmem:[#allocation2 + $0x60] sm:$0xff]
    %v52 = vld [vmem:[#allocation2 + $0x68] sm:$0xff]
    %v53 = vld [vmem:[#allocation2 + $0x70] sm:$0xff]
    %v54 = vld [vmem:[#allocation2 + $0x78] sm:$0xff]
    %v55 = vld [vmem:[#allocation2 + $0x80] sm:$0xff]
    %v56 = vld [vmem:[#allocation2 + $0x88] sm:$0xff]
    %v57 = vld [vmem:[#allocation2 + $0x90] sm:$0xff]
    %v58 = vld [vmem:[#allocation2 + $0x98] sm:$0xff]
    %vm59 = vcmask 326656
    %v61 = vsel %vm59, %v38, 0
    %63 = vmatprep.subr.mxu0 %v40
    %64 = vmatpush1.msra.mxu0 %v39
    %65 = vmatprep.subr.mxu0 %v44
    %66 = vmatpush1.msra.mxu0 %v43
    %67 = vmatprep.subr.mxu0 %v48
    %68 = vmatpush1.msra.mxu0 %v47
    %69 = vmatprep.subr.mxu0 %v52
    %70 = vmatpush1.msra.mxu0 %v51
    %71 = vmatprep.subr.mxu0 %v56
    %72 = vmatpush1.msra.mxu0 %v55
    %73 = vmatprep.subr.mxu0 0.0
    %74 = vmatpush1.msra.mxu0 0.0
    %75 = vmatprep.subr.mxu0 0.0
    %76 = vmatpush1.msra.mxu0 0.0
    %77 = vmatprep.subr.mxu0 0.0
    %78 = vmatpush1.msra.mxu0 0.0
    %79 = vmatprep.subr.mxu0 0.0
    %80 = vmatpush1.msra.mxu0 0.0
    %81 = vmatprep.subr.mxu0 0.0
    %82 = vmatpush1.msra.mxu0 0.0
    %83 = vmatprep.subr.mxu0 0.0
    %84 = vmatpush1.msra.mxu0 0.0
    %85 = vmatprep.subr.mxu0 0.0
    %86 = vmatpush1.msra.mxu0 0.0
    %87 = vmatprep.subr.mxu0 0.0
    %88 = vmatpush1.msra.mxu0 0.0
    %89 = vmatprep.subr.mxu0 0.0
    %90 = vmatpush1.msra.mxu0 0.0
    %91 = vmatprep.subr.mxu0 0.0
    %92 = vmatpush1.msra.mxu0 0.0
    %93 = vmatprep.subr.mxu0 0.0
    %94 = vmatpush1.msra.mxu0 0.0
    %95 = vmatprep.subr.mxu0 0.0
    %96 = vmatpush1.msra.mxu0 0.0
    %97 = vmatprep.subr.mxu0 0.0
    %98 = vmatpush1.msra.mxu0 0.0
    %99 = vmatprep.subr.mxu0 0.0
    %100 = vmatpush1.msra.mxu0 0.0
    %101 = vmatprep.subr.mxu0 0.0
    %102 = vmatpush1.msra.mxu0 0.0
    %103 = vmatprep.subr.mxu0 0.0
    %104 = vmatpush1.msra.mxu0 0.0
    %105 = vmatprep.subr.mxu0 0.0
    %106 = vmatpush1.msra.mxu0 0.0
    %107 = vmatprep.subr.mxu0 0.0
    %108 = vmatpush1.msra.mxu0 0.0
    %109 = vmatprep.subr.mxu0 0.0
    %110 = vmatpush1.msra.mxu0 0.0
    %111 = vmatprep.subr.mxu0 0.0
    %112 = vmatpush1.msra.mxu0 0.0
    %113 = vmatprep.subr.mxu0 0.0
    %114 = vmatpush1.msra.mxu0 0.0
    %115 = vmatprep.subr.mxu0 0.0
    %116 = vmatpush1.msra.mxu0 0.0
    %117 = vmatprep.subr.mxu0 0.0
    %118 = vmatpush1.msra.mxu0 0.0
    %119 = vmatprep.subr.mxu0 0.0
    %120 = vmatpush1.msra.mxu0 0.0
    %121 = vmatprep.subr.mxu0 0.0
    %122 = vmatpush1.msra.mxu0 0.0
    %123 = vmatprep.subr.mxu0 0.0
    %124 = vmatpush1.msra.mxu0 0.0
    %125 = vmatprep.subr.mxu0 0.0
    %126 = vmatpush1.msra.mxu0 0.0
    %127 = vmatprep.mubr.f32.mxu0 0.0
    %128 = vmatmul.mubr.f32.gmra.mrb[0].mxu0 %v61
    %v129 = vpop.f32.mrb[0].mxu0
    %v130 = vadd.f32 0.0, %v129
    %v131 = vpop.f32.mrb[0].mxu0
    %v132 = vadd.f32 0.0, %v131
    %133 = vdwg.mxu0
    %134 = vmatprep.subr.mxu0 %v42
    %135 = vmatpush1.msra.mxu0 %v41
    %136 = vmatprep.subr.mxu0 %v46
    %137 = vmatpush1.msra.mxu0 %v45
    %138 = vmatprep.subr.mxu0 %v50
    %139 = vmatpush1.msra.mxu0 %v49
    %140 = vmatprep.subr.mxu0 %v54
    %141 = vmatpush1.msra.mxu0 %v53
    %142 = vmatprep.subr.mxu0 %v58
    %143 = vmatpush1.msra.mxu0 %v57
    %144 = vmatprep.subr.mxu0 0.0
    %145 = vmatpush1.msra.mxu0 0.0
    %146 = vmatprep.subr.mxu0 0.0
    %147 = vmatpush1.msra.mxu0 0.0
    %148 = vmatprep.subr.mxu0 0.0
    %149 = vmatpush1.msra.mxu0 0.0
    %150 = vmatprep.subr.mxu0 0.0
    %151 = vmatpush1.msra.mxu0 0.0
    %152 = vmatprep.subr.mxu0 0.0
    %153 = vmatpush1.msra.mxu0 0.0
    %154 = vmatprep.subr.mxu0 0.0
    %155 = vmatpush1.msra.mxu0 0.0
    %156 = vmatprep.subr.mxu0 0.0
    %157 = vmatpush1.msra.mxu0 0.0
    %158 = vmatprep.subr.mxu0 0.0
    %159 = vmatpush1.msra.mxu0 0.0
    %160 = vmatprep.subr.mxu0 0.0
    %161 = vmatpush1.msra.mxu0 0.0
    %162 = vmatprep.subr.mxu0 0.0
    %163 = vmatpush1.msra.mxu0 0.0
    %164 = vmatprep.subr.mxu0 0.0
    %165 = vmatpush1.msra.mxu0 0.0
    %166 = vmatprep.subr.mxu0 0.0
    %167 = vmatpush1.msra.mxu0 0.0
    %168 = vmatprep.subr.mxu0 0.0
    %169 = vmatpush1.msra.mxu0 0.0
    %170 = vmatprep.subr.mxu0 0.0
    %171 = vmatpush1.msra.mxu0 0.0
    %172 = vmatprep.subr.mxu0 0.0
    %173 = vmatpush1.msra.mxu0 0.0
    %174 = vmatprep.subr.mxu0 0.0
    %175 = vmatpush1.msra.mxu0 0.0
    %176 = vmatprep.subr.mxu0 0.0
    %177 = vmatpush1.msra.mxu0 0.0
    %178 = vmatprep.subr.mxu0 0.0
    %179 = vmatpush1.msra.mxu0 0.0
    %180 = vmatprep.subr.mxu0 0.0
    %181 = vmatpush1.msra.mxu0 0.0
    %182 = vmatprep.subr.mxu0 0.0
    %183 = vmatpush1.msra.mxu0 0.0
    %184 = vmatprep.subr.mxu0 0.0
    %185 = vmatpush1.msra.mxu0 0.0
    %186 = vmatprep.subr.mxu0 0.0
    %187 = vmatpush1.msra.mxu0 0.0
    %188 = vmatprep.subr.mxu0 0.0
    %189 = vmatpush1.msra.mxu0 0.0
    %190 = vmatprep.subr.mxu0 0.0
    %191 = vmatpush1.msra.mxu0 0.0
    %192 = vmatprep.subr.mxu0 0.0
    %193 = vmatpush1.msra.mxu0 0.0
    %194 = vmatprep.subr.mxu0 0.0
    %195 = vmatpush1.msra.mxu0 0.0
    %196 = vmatprep.subr.mxu0 0.0
    %197 = vmatpush1.msra.mxu0 0.0
    %198 = vmatprep.mubr.f32.mxu0 0.0
    %199 = vmatmul.mubr.f32.gmra.mrb[0].mxu0 %v61
    %v200 = vpop.f32.mrb[0].mxu0
    %v201 = vadd.f32 0.0, %v200
    %v202 = vpop.f32.mrb[0].mxu0
    %v203 = vadd.f32 0.0, %v202
    %204 = vdwg.mxu0
    %v205 = vadd.f32 %v130, %v132
    %206 = vadd.xlane.f32.xlu0 %v205
    %v207 = vpop.xlane.xlu0 %206
    %v208 = vmul.f32 %v207, 0.00390625
    %v209 = vmul.f32 %v130, %v130
    %v210 = vmul.f32 %v132, %v132
    %v211 = vadd.f32 %v209, %v210
    %212 = vadd.xlane.f32.xlu0 %v211
    %v213 = vpop.xlane.xlu0 %212
    %v214 = vmul.f32 %v213, 0.00390625
    %v215 = vmul.f32 %v208, %v208
    %v216 = vsub.f32 %v214, %v215
    %v217 = vsub.f32 %v130, %v208
    %v218 = vsub.f32 %v132, %v208
    %v219 = vadd.f32 %v216, 1e-05
    %v220 = vrsqrt.pop %v219
    %v221 = vmul.f32 %v217, %v220
    %v222 = vmul.f32 %v218, %v220
    %v223 = vmax.f32 %v221, 0.0
    %v224 = vmax.f32 %v222, 0.0
    %225 = vst [vmem:[#allocation7] sm:$0xff] %v223
    %226 = vst [vmem:[#allocation7 + $0x8] sm:$0xff] %v224
    %v227 = vadd.f32 %v201, %v203
    %228 = vadd.xlane.f32.xlu0 %v227
    %v229 = vpop.xlane.xlu0 %228
    %v230 = vmul.f32 %v229, 0.00390625
    %v231 = vmul.f32 %v201, %v201
    %v232 = vmul.f32 %v203, %v203
    %v233 = vadd.f32 %v231, %v232
    %234 = vadd.xlane.f32.xlu0 %v233
    %v235 = vpop.xlane.xlu0 %234
    %v236 = vmul.f32 %v235, 0.00390625
    %v237 = vmul.f32 %v230, %v230
    %v238 = vsub.f32 %v236, %v237
    %v239 = vsub.f32 %v201, %v230
    %v240 = vsub.f32 %v203, %v230
    %v241 = vadd.f32 %v238, 1e-05
    %v242 = vrsqrt.pop %v241
    %v243 = vmul.f32 %v239, %v242
    %v244 = vmul.f32 %v240, %v242
    %v245 = vmax.f32 %v243, 0.0
    %v246 = vmax.f32 %v244, 0.0
    %s247 = scalar_lea.vmem [#allocation7], 16
    %248 = vst [vmem:[%s247] sm:$0xff] %v245
    %249 = vst [vmem:[%s247 + $0x8] sm:$0xff] %v246
    // Predicated region
    $region18: #{tpu_custom_call.1} parent=1 // pred_check
      _
    $region19: #{tpu_custom_call.1} parent=1 // pred_check_branch
      %251 = sbr.rel (0) target = $region21
    $region20: #{tpu_custom_call.1} parent=1 // pred_region
      %s253 = ssub.s32 512, 512
      %254 = vsyncadd [#allocation4], %s253
      %s255 = sshll.u32 [#allocation7], 4
      %s256 = int_to_ptr.vmem [resolvable:$true] %s255
      %261 = dma.vmem_to_hbm [thread:$0]  %s256, 512, %s2, [#allocation4], 256, 256, 16
    $region21: #{tpu_custom_call.1} parent=1 // pred_fallthru
      _
    // Predicated region
    $region22: #{tpu_custom_call.1} parent=1 // pred_check
      _
    $region23: #{tpu_custom_call.1} parent=1 // pred_check_branch
      %263 = sbr.rel (0) target = $region25
    $region24: #{tpu_custom_call.1} parent=1 // pred_region
      %264 = dma.done [#allocation4], 512
    $region25: #{tpu_custom_call.1} parent=1 // pred_fallthru
      _
    %265 = vsyncpa [#allocation3], 1
    %266 = vsyncpa [#allocation6], 1
    %267 = vsyncpa [#allocation4], 1

</llo_original>
